<compile_context>
chip_gen: v7x
topology: tpu7x:2x2x1
jax: 0.10.0
libtpu: 0.0.40
codegen_flags: <defaults>
</compile_context>

<pallas_src>
import jax
import jax.numpy as jnp
from jax import lax
from jax.experimental import pallas as pl
from jax.experimental.pallas import tpu as pltpu


def _rgc_kernel(a_ref, ia_ref, s_ref, p_ref,
                sc_ref, sic_ref, pc_ref, pic_ref):
    # Adjacency may arrive in a narrow dtype (bf16/{0,1} exact); compute in f32.
    a = a_ref[...].astype(jnp.float32)     # (M, K)
    ia = ia_ref[...].astype(jnp.float32)   # (M, K)
    s = s_ref[...].astype(jnp.float32)     # (M, Dt)
    p = p_ref[...].astype(jnp.float32)     # (K, Dt)

    # Forward products: A @ P, IA @ P.  (P stays MXU-weight-resident across
    # both dots; separate stores avoid any concat copies.)
    sc_ref[...] = jnp.dot(a, p, preferred_element_type=jnp.float32
                          ).astype(sc_ref.dtype)
    sic_ref[...] = jnp.dot(ia, p, preferred_element_type=jnp.float32
                           ).astype(sic_ref.dtype)

    # Transposed products: contract over the student axis (axis 0 of both
    # operands), i.e. A.T @ S / IA.T @ S, with no materialized HBM transpose.
    dims = (((0,), (0,)), ((), ()))
    pc_ref[...] = lax.dot_general(a, s, dims,
                                  preferred_element_type=jnp.float32
                                  ).astype(pc_ref.dtype)
    pic_ref[...] = lax.dot_general(ia, s, dims,
                                   preferred_element_type=jnp.float32
                                   ).astype(pic_ref.dtype)


@jax.jit
def rgc_layer(student_embeds, problem_embeds, a_matrix, ia_matrix):
    """Pallas implementation of RGCLayer.forward.

    Returns (student_embeds_c, student_embeds_ic,
             problem_embeds_c, problem_embeds_ic), matching the PyTorch module.
    """
    m, d = student_embeds.shape
    k, d2 = problem_embeds.shape
    assert d == d2 and a_matrix.shape == (m, k) and ia_matrix.shape == (m, k)

    out_dtype = jnp.result_type(student_embeds.dtype, problem_embeds.dtype)

    # Parallel grid over the embedding dim: 256-wide tiles (MXU-friendly on
    # v6e/v7x, shardable across v7x's 2 TensorCores) when D allows, else one
    # full-extent tile.  All four products are independent along D.
    if d > 256 and d % 256 == 0:
        td = 256
    else:
        td = d
    n_d = d // td

    itemsize = lambda x: jnp.dtype(x.dtype).itemsize
    flops = 8 * m * k * d  # 4 matmuls x 2*M*K*D
    bytes_accessed = (a_matrix.size * itemsize(a_matrix)
                      + ia_matrix.size * itemsize(ia_matrix)
                      + student_embeds.size * itemsize(student_embeds)
                      + problem_embeds.size * itemsize(problem_embeds)
                      + 2 * (m * d + k * d) * jnp.dtype(out_dtype).itemsize)
    cost = pl.CostEstimate(flops=flops, transcendentals=0,
                           bytes_accessed=bytes_accessed)

    return pl.pallas_call(
        _rgc_kernel,
        out_shape=(
            jax.ShapeDtypeStruct((m, d), out_dtype),   # S_c
            jax.ShapeDtypeStruct((m, d), out_dtype),   # S_ic
            jax.ShapeDtypeStruct((k, d), out_dtype),   # P_c
            jax.ShapeDtypeStruct((k, d), out_dtype),   # P_ic
        ),
        grid=(n_d,),
        in_specs=[
            pl.BlockSpec((m, k), lambda j: (0, 0)),    # A: resident across D tiles
            pl.BlockSpec((m, k), lambda j: (0, 0)),    # IA: resident across D tiles
            pl.BlockSpec((m, td), lambda j: (0, j)),   # S: D-sliced
            pl.BlockSpec((k, td), lambda j: (0, j)),   # P: D-sliced
        ],
        out_specs=(
            pl.BlockSpec((m, td), lambda j: (0, j)),
            pl.BlockSpec((m, td), lambda j: (0, j)),
            pl.BlockSpec((k, td), lambda j: (0, j)),
            pl.BlockSpec((k, td), lambda j: (0, j)),
        ),
        compiler_params=pltpu.CompilerParams(
            dimension_semantics=("parallel",)),
        cost_estimate=cost,
    )(a_matrix, ia_matrix, student_embeds, problem_embeds)


if __name__ == "__main__":
    num_students = 64
    num_problems = 48
    embed_dim = 128

    key = jax.random.PRNGKey(0)
    k_s, k_p, k_resp, k_mask = jax.random.split(key, 4)

    student_embeds = jax.random.normal(k_s, (num_students, embed_dim),
                                       dtype=jnp.float32)
    problem_embeds = jax.random.normal(k_p, (num_problems, embed_dim),
                                       dtype=jnp.float32)

    # Synthetic response graph: each (student, problem) pair interacts with
    # prob 0.3; correct with prob 0.5 given interaction. a/ia are disjoint
    # binary adjacency matrices (dense stand-ins for torch.sparse).
    # Carried in bf16 in HBM: {0,1} values are exact in bf16 and halve the
    # adjacency DMA bytes (the traffic-dominant operand at scale).
    interacted = jax.random.bernoulli(k_mask, 0.3, (num_students, num_problems))
    correct = jax.random.bernoulli(k_resp, 0.5, (num_students, num_problems))
    a_matrix = (interacted & correct).astype(jnp.bfloat16)
    ia_matrix = (interacted & ~correct).astype(jnp.bfloat16)

    outs = rgc_layer(student_embeds, problem_embeds, a_matrix, ia_matrix)
    outs = jax.block_until_ready(outs)

    # Reference check against plain-JAX matmuls (same order as the module:
    # S_c, S_ic, P_c, P_ic).
    a32 = a_matrix.astype(jnp.float32)
    ia32 = ia_matrix.astype(jnp.float32)
    refs = (a32 @ problem_embeds,
            ia32 @ problem_embeds,
            a32.T @ student_embeds,
            ia32.T @ student_embeds)
    for got, ref in zip(outs, refs):
        assert got.shape == ref.shape and got.dtype == jnp.float32
        assert jnp.allclose(got, ref, atol=1e-5, rtol=1e-5)

    print("KERNEL_OK")
</pallas_src>

<mosaic_0001>
module attributes {stable_mosaic.version = 11 : i64} {
  func.func @_rgc_kernel(%arg0: i32, %arg1: memref<64x48xbf16, #tpu.memory_space<vmem>>, %arg2: memref<64x48xbf16, #tpu.memory_space<vmem>>, %arg3: memref<64x128xf32, #tpu.memory_space<vmem>>, %arg4: memref<48x128xf32, #tpu.memory_space<vmem>>, %arg5: memref<64x128xf32, #tpu.memory_space<vmem>>, %arg6: memref<64x128xf32, #tpu.memory_space<vmem>>, %arg7: memref<48x128xf32, #tpu.memory_space<vmem>>, %arg8: memref<48x128xf32, #tpu.memory_space<vmem>>) attributes {dimension_semantics = [#tpu.dimension_semantics<parallel>], iteration_bounds = array<i64: 1>, scalar_prefetch = 0 : i64, scratch_operands = 0 : i64, tpu.core_type = #tpu.core_type<tc>, window_params = [{pipeline_mode = #tpu.pipeline_mode<synchronous>, transform_indices = @transform_0, window_bounds = array<i64: 64, 48>}, {pipeline_mode = #tpu.pipeline_mode<synchronous>, transform_indices = @transform_1, window_bounds = array<i64: 64, 48>}, {transform_indices = @transform_2, window_bounds = array<i64: 64, 128>}, {transform_indices = @transform_3, window_bounds = array<i64: 48, 128>}, {transform_indices = @transform_4, window_bounds = array<i64: 64, 128>}, {transform_indices = @transform_5, window_bounds = array<i64: 64, 128>}, {transform_indices = @transform_6, window_bounds = array<i64: 48, 128>}, {transform_indices = @transform_7, window_bounds = array<i64: 48, 128>}]} {
    %c0 = arith.constant 0 : index
    %c0_0 = arith.constant 0 : index
    %0 = vector.load %arg1[%c0, %c0_0] : memref<64x48xbf16, #tpu.memory_space<vmem>>, vector<64x48xbf16>
    %1 = arith.extf %0 : vector<64x48xbf16> to vector<64x48xf32>
    %c0_1 = arith.constant 0 : index
    %c0_2 = arith.constant 0 : index
    %2 = vector.load %arg2[%c0_1, %c0_2] : memref<64x48xbf16, #tpu.memory_space<vmem>>, vector<64x48xbf16>
    %3 = arith.extf %2 : vector<64x48xbf16> to vector<64x48xf32>
    %c0_3 = arith.constant 0 : index
    %c0_4 = arith.constant 0 : index
    %4 = vector.load %arg3[%c0_3, %c0_4] : memref<64x128xf32, #tpu.memory_space<vmem>>, vector<64x128xf32>
    %c0_5 = arith.constant 0 : index
    %c0_6 = arith.constant 0 : index
    %5 = vector.load %arg4[%c0_5, %c0_6] : memref<48x128xf32, #tpu.memory_space<vmem>>, vector<48x128xf32>
    %cst = arith.constant dense<0.000000e+00> : vector<64x128xf32>
    %6 = tpu.matmul %1, %5, %cst {dimension_numbers = #tpu.dot_dimension_numbers<[1], [0], [0], [1], [0, 0, 1, 1], [], []>} : vector<64x48xf32>, vector<48x128xf32>, vector<64x128xf32> -> vector<64x128xf32>
    %c0_7 = arith.constant 0 : index
    %c0_8 = arith.constant 0 : index
    %7 = vector.load %arg5[%c0_7, %c0_8] : memref<64x128xf32, #tpu.memory_space<vmem>>, vector<64x128xf32>
    tpu.vector_store %arg5[%c0_7, %c0_8], %6 {strides = array<i32>} : memref<64x128xf32, #tpu.memory_space<vmem>>, vector<64x128xf32>,
    %cst_9 = arith.constant dense<0.000000e+00> : vector<64x128xf32>
    %8 = tpu.matmul %3, %5, %cst_9 {dimension_numbers = #tpu.dot_dimension_numbers<[1], [0], [0], [1], [0, 0, 1, 1], [], []>} : vector<64x48xf32>, vector<48x128xf32>, vector<64x128xf32> -> vector<64x128xf32>
    %c0_10 = arith.constant 0 : index
    %c0_11 = arith.constant 0 : index
    %9 = vector.load %arg6[%c0_10, %c0_11] : memref<64x128xf32, #tpu.memory_space<vmem>>, vector<64x128xf32>
    tpu.vector_store %arg6[%c0_10, %c0_11], %8 {strides = array<i32>} : memref<64x128xf32, #tpu.memory_space<vmem>>, vector<64x128xf32>,
    %cst_12 = arith.constant dense<0.000000e+00> : vector<48x128xf32>
    %10 = tpu.matmul %1, %4, %cst_12 {dimension_numbers = #tpu.dot_dimension_numbers<[0], [0], [1], [1], [0, 1, 1, 1], [], []>} : vector<64x48xf32>, vector<64x128xf32>, vector<48x128xf32> -> vector<48x128xf32>
    %c0_13 = arith.constant 0 : index
    %c0_14 = arith.constant 0 : index
    %11 = vector.load %arg7[%c0_13, %c0_14] : memref<48x128xf32, #tpu.memory_space<vmem>>, vector<48x128xf32>
    tpu.vector_store %arg7[%c0_13, %c0_14], %10 {strides = array<i32>} : memref<48x128xf32, #tpu.memory_space<vmem>>, vector<48x128xf32>,
    %cst_15 = arith.constant dense<0.000000e+00> : vector<48x128xf32>
    %12 = tpu.matmul %3, %4, %cst_15 {dimension_numbers = #tpu.dot_dimension_numbers<[0], [0], [1], [1], [0, 1, 1, 1], [], []>} : vector<64x48xf32>, vector<64x128xf32>, vector<48x128xf32> -> vector<48x128xf32>
    %c0_16 = arith.constant 0 : index
    %c0_17 = arith.constant 0 : index
    %13 = vector.load %arg8[%c0_16, %c0_17] : memref<48x128xf32, #tpu.memory_space<vmem>>, vector<48x128xf32>
    tpu.vector_store %arg8[%c0_16, %c0_17], %12 {strides = array<i32>} : memref<48x128xf32, #tpu.memory_space<vmem>>, vector<48x128xf32>,
    return
  }
  func.func @transform_0(%arg0: i32) -> (i32, i32) {
    %c0_i32 = arith.constant 0 : i32
    %c0_i32_0 = arith.constant 0 : i32
    %c0_i32_1 = arith.constant 0 : i32
    return %c0_i32, %c0_i32_0 : i32, i32
  }
  func.func @transform_1(%arg0: i32) -> (i32, i32) {
    %c0_i32 = arith.constant 0 : i32
    %c0_i32_0 = arith.constant 0 : i32
    %c0_i32_1 = arith.constant 0 : i32
    return %c0_i32, %c0_i32_0 : i32, i32
  }
  func.func @transform_2(%arg0: i32) -> (i32, i32) {
    %c0_i32 = arith.constant 0 : i32
    %c0_i32_0 = arith.constant 0 : i32
    return %c0_i32, %arg0 : i32, i32
  }
  func.func @transform_3(%arg0: i32) -> (i32, i32) {
    %c0_i32 = arith.constant 0 : i32
    %c0_i32_0 = arith.constant 0 : i32
    return %c0_i32, %arg0 : i32, i32
  }
  func.func @transform_4(%arg0: i32) -> (i32, i32) {
    %c0_i32 = arith.constant 0 : i32
    %c0_i32_0 = arith.constant 0 : i32
    return %c0_i32, %arg0 : i32, i32
  }
  func.func @transform_5(%arg0: i32) -> (i32, i32) {
    %c0_i32 = arith.constant 0 : i32
    %c0_i32_0 = arith.constant 0 : i32
    return %c0_i32, %arg0 : i32, i32
  }
  func.func @transform_6(%arg0: i32) -> (i32, i32) {
    %c0_i32 = arith.constant 0 : i32
    %c0_i32_0 = arith.constant 0 : i32
    return %c0_i32, %arg0 : i32, i32
  }
  func.func @transform_7(%arg0: i32) -> (i32, i32) {
    %c0_i32 = arith.constant 0 : i32
    %c0_i32_0 = arith.constant 0 : i32
    return %c0_i32, %arg0 : i32, i32
  }
}

</mosaic_0001>

<llo_original>
// kernel: rgc_layer.1
$region0: #{rgc_layer.1}
  #allocation0 [shape = 'u32[]', space=smem, size = 0x4, offset = 0x4, fixed_abs, tag = 'smem constant byte address 0x4 - core index']
  #allocation1 [shape = 'u32[144,128]{1,0:T(1,128)}', space=vmem, size = 0x12000, scoped, tag = 'internal scratch']
  %s0 = inlined_call_operand.vmem [shape: bf16[64,48], index: 0, kind: input, shape index: {}]
  %s1 = inlined_call_operand.vmem [shape: bf16[64,48], index: 1, kind: input, shape index: {}]
  %s2 = inlined_call_operand.vmem [shape: f32[64,128], index: 2, kind: input, shape index: {}]
  %s3 = inlined_call_operand.vmem [shape: f32[48,128], index: 3, kind: input, shape index: {}]
  %s4 = inlined_call_operand.hbm [shape: f32[64,128], index: 4, kind: output, shape index: {0}]
  %s5 = inlined_call_operand.hbm [shape: f32[64,128], index: 5, kind: output, shape index: {1}]
  %s6 = inlined_call_operand.hbm [shape: f32[48,128], index: 6, kind: output, shape index: {2}]
  %s7 = inlined_call_operand.hbm [shape: f32[48,128], index: 7, kind: output, shape index: {3}]
  %8 = xla_tuple %s4, %s5, %s6, %s7
  %s9 = sld [smem:[#allocation0]]
  $region50: #{rgc_layer.1} parent=0
    _
  %s11 = ssub.s32 1, %s9
  %s12 = scalar_select 0, %s11, %s9
  $region1: #{rgc_layer.1} parent=0
    #allocation2 [shape = 'u8[32768]{0}', space=vmem, size = 0x8000, scoped, tag = 'output window, operand 0, single buffered']
    #allocation3 [shape = 's32[1]{0}', space=sflag, size = 0x4, scoped, tag = 'scoped memory for rgc_layer.1']
    #allocation4 [shape = 'u8[32768]{0}', space=vmem, size = 0x8000, scoped, tag = 'output window, operand 1, single buffered']
    #allocation5 [shape = 's32[1]{0}', space=sflag, size = 0x4, scoped, tag = 'scoped memory for rgc_layer.1']
    #allocation6 [shape = 'u8[24576]{0}', space=vmem, size = 0x6000, scoped, tag = 'output window, operand 2, single buffered']
    #allocation7 [shape = 'u8[24576]{0}', space=vmem, size = 0x6000, scoped, tag = 'output window, operand 3, single buffered']
    #allocation8 [shape = 's32[1]{0}', space=sflag, size = 0x4, scoped, tag = 'scoped memory for rgc_layer.1']
    %13 = vsyncpa [#allocation3], 0
    %14 = vsyncpa [#allocation5], 0
    %15 = vsyncpa [#allocation8], 0
    // Predicated region
    $region2: #{rgc_layer.1} parent=1 // pred_check
      _
    $region3: #{rgc_layer.1} parent=1 // pred_check_branch
      %17 = sbr.rel (0) target = $region5
    $region4: #{rgc_layer.1} parent=1 // pred_region
      _
    $region5: #{rgc_layer.1} parent=1 // pred_fallthru
      _
    // Predicated region
    $region6: #{rgc_layer.1} parent=1 // pred_check
      _
    $region7: #{rgc_layer.1} parent=1 // pred_check_branch
      %19 = sbr.rel (0) target = $region9
    $region8: #{rgc_layer.1} parent=1 // pred_region
      _
    $region9: #{rgc_layer.1} parent=1 // pred_fallthru
      _
    // Predicated region
    $region10: #{rgc_layer.1} parent=1 // pred_check
      _
    $region11: #{rgc_layer.1} parent=1 // pred_check_branch
      %21 = sbr.rel (0) target = $region13
    $region12: #{rgc_layer.1} parent=1 // pred_region
      _
    $region13: #{rgc_layer.1} parent=1 // pred_fallthru
      _
    // Predicated region
    $region14: #{rgc_layer.1} parent=1 // pred_check
      _
    $region15: #{rgc_layer.1} parent=1 // pred_check_branch
      %23 = sbr.rel (0) target = $region17
    $region16: #{rgc_layer.1} parent=1 // pred_region
      _
    $region17: #{rgc_layer.1} parent=1 // pred_fallthru
      _
    %v24 = vld [vmem:[%s0] sm:$0xf]
    %v25 = vld [vmem:[%s0 + $0x4] sm:$0xf]
    %v26 = vld [vmem:[%s0 + $0x8] sm:$0xf]
    %v27 = vld [vmem:[%s0 + $0xc] sm:$0xf]
    %v28 = vld [vmem:[%s0 + $0x10] sm:$0xf]
    %v29 = vld [vmem:[%s0 + $0x14] sm:$0xf]
    %v30 = vld [vmem:[%s0 + $0x18] sm:$0xf]
    %v31 = vld [vmem:[%s0 + $0x1c] sm:$0xf]
    %v32 = vunpack.c.l.bf16 %v24
    %v33 = vunpack.c.l.bf16 %v25
    %v34 = vunpack.c.l.bf16 %v26
    %v35 = vunpack.c.l.bf16 %v27
    %v36 = vunpack.c.l.bf16 %v28
    %v37 = vunpack.c.l.bf16 %v29
    %v38 = vunpack.c.l.bf16 %v30
    %v39 = vunpack.c.l.bf16 %v31
    %v40 = vld [vmem:[%s1] sm:$0xf]
    %v41 = vld [vmem:[%s1 + $0x4] sm:$0xf]
    %v42 = vld [vmem:[%s1 + $0x8] sm:$0xf]
    %v43 = vld [vmem:[%s1 + $0xc] sm:$0xf]
    %v44 = vld [vmem:[%s1 + $0x10] sm:$0xf]
    %v45 = vld [vmem:[%s1 + $0x14] sm:$0xf]
    %v46 = vld [vmem:[%s1 + $0x18] sm:$0xf]
    %v47 = vld [vmem:[%s1 + $0x1c] sm:$0xf]
    %v48 = vunpack.c.l.bf16 %v40
    %v49 = vunpack.c.l.bf16 %v41
    %v50 = vunpack.c.l.bf16 %v42
    %v51 = vunpack.c.l.bf16 %v43
    %v52 = vunpack.c.l.bf16 %v44
    %v53 = vunpack.c.l.bf16 %v45
    %v54 = vunpack.c.l.bf16 %v46
    %v55 = vunpack.c.l.bf16 %v47
    %v56 = vld [vmem:[%s2] sm:$0xff]
    %v57 = vld [vmem:[%s2 + $0x8] sm:$0xff]
    %v58 = vld [vmem:[%s2 + $0x10] sm:$0xff]
    %v59 = vld [vmem:[%s2 + $0x18] sm:$0xff]
    %v60 = vld [vmem:[%s2 + $0x20] sm:$0xff]
    %v61 = vld [vmem:[%s2 + $0x28] sm:$0xff]
    %v62 = vld [vmem:[%s2 + $0x30] sm:$0xff]
    %v63 = vld [vmem:[%s2 + $0x38] sm:$0xff]
    %v64 = vld [vmem:[%s3] sm:$0xff]
    %v65 = vld [vmem:[%s3 + $0x8] sm:$0xff]
    %v66 = vld [vmem:[%s3 + $0x10] sm:$0xff]
    %v67 = vld [vmem:[%s3 + $0x18] sm:$0xff]
    %v68 = vld [vmem:[%s3 + $0x20] sm:$0xff]
    %v69 = vld [vmem:[%s3 + $0x28] sm:$0xff]
    %vm70 = vcmask 392192
    %v72 = vsel %vm70, %v32, 0
    %v75 = vsel %vm70, %v33, 0
    %v78 = vsel %vm70, %v34, 0
    %v81 = vsel %vm70, %v35, 0
    %v84 = vsel %vm70, %v36, 0
    %v87 = vsel %vm70, %v37, 0
    %v90 = vsel %vm70, %v38, 0
    %v93 = vsel %vm70, %v39, 0
    %95 = vmatprep.subr.mxu0 0.0
    %96 = vmatpush1.msra.mxu0 %v64
    %97 = vmatprep.subr.mxu0 0.0
    %98 = vmatpush1.msra.mxu0 %v65
    %99 = vmatprep.subr.mxu0 0.0
    %100 = vmatpush1.msra.mxu0 %v66
    %101 = vmatprep.subr.mxu0 0.0
    %102 = vmatpush1.msra.mxu0 %v67
    %103 = vmatprep.subr.mxu0 0.0
    %104 = vmatpush1.msra.mxu0 %v68
    %105 = vmatprep.subr.mxu0 0.0
    %106 = vmatpush1.msra.mxu0 %v69
    %107 = vmatprep.subr.mxu0 0.0
    %108 = vmatpush1.msra.mxu0 0.0
    %109 = vmatprep.subr.mxu0 0.0
    %110 = vmatpush1.msra.mxu0 0.0
    %111 = vmatprep.subr.mxu0 0.0
    %112 = vmatpush1.msra.mxu0 0.0
    %113 = vmatprep.subr.mxu0 0.0
    %114 = vmatpush1.msra.mxu0 0.0
    %115 = vmatprep.subr.mxu0 0.0
    %116 = vmatpush1.msra.mxu0 0.0
    %117 = vmatprep.subr.mxu0 0.0
    %118 = vmatpush1.msra.mxu0 0.0
    %119 = vmatprep.subr.mxu0 0.0
    %120 = vmatpush1.msra.mxu0 0.0
    %121 = vmatprep.subr.mxu0 0.0
    %122 = vmatpush1.msra.mxu0 0.0
    %123 = vmatprep.subr.mxu0 0.0
    %124 = vmatpush1.msra.mxu0 0.0
    %125 = vmatprep.subr.mxu0 0.0
    %126 = vmatpush1.msra.mxu0 0.0
    %127 = vmatprep.subr.mxu0 0.0
    %128 = vmatpush1.msra.mxu0 0.0
    %129 = vmatprep.subr.mxu0 0.0
    %130 = vmatpush1.msra.mxu0 0.0
    %131 = vmatprep.subr.mxu0 0.0
    %132 = vmatpush1.msra.mxu0 0.0
    %133 = vmatprep.subr.mxu0 0.0
    %134 = vmatpush1.msra.mxu0 0.0
    %135 = vmatprep.subr.mxu0 0.0
    %136 = vmatpush1.msra.mxu0 0.0
    %137 = vmatprep.subr.mxu0 0.0
    %138 = vmatpush1.msra.mxu0 0.0
    %139 = vmatprep.subr.mxu0 0.0
    %140 = vmatpush1.msra.mxu0 0.0
    %141 = vmatprep.subr.mxu0 0.0
    %142 = vmatpush1.msra.mxu0 0.0
    %143 = vmatprep.subr.mxu0 0.0
    %144 = vmatpush1.msra.mxu0 0.0
    %145 = vmatprep.subr.mxu0 0.0
    %146 = vmatpush1.msra.mxu0 0.0
    %147 = vmatprep.subr.mxu0 0.0
    %148 = vmatpush1.msra.mxu0 0.0
    %149 = vmatprep.subr.mxu0 0.0
    %150 = vmatpush1.msra.mxu0 0.0
    %151 = vmatprep.subr.mxu0 0.0
    %152 = vmatpush1.msra.mxu0 0.0
    %153 = vmatprep.subr.mxu0 0.0
    %154 = vmatpush1.msra.mxu0 0.0
    %155 = vmatprep.subr.mxu0 0.0
    %156 = vmatpush1.msra.mxu0 0.0
    %157 = vmatprep.subr.mxu0 0.0
    %158 = vmatpush1.msra.mxu0 0.0
    %159 = vmatprep.mubr.f32.mxu0 0.0
    %160 = vmatmul.mubr.f32.gmra.mrb[0].mxu0 %v72
    %v161 = vpop.f32.mrb[0].mxu0
    %v162 = vadd.f32 0.0, %v161
    %v163 = vpop.f32.mrb[0].mxu0
    %164 = vmatprep.mubr.f32.mxu0 0.0
    %165 = vmatmul.mubr.f32.gmra.mrb[0].mxu0 %v75
    %v166 = vpop.f32.mrb[0].mxu0
    %v167 = vadd.f32 0.0, %v166
    %v168 = vpop.f32.mrb[0].mxu0
    %169 = vmatprep.mubr.f32.mxu0 0.0
    %170 = vmatmul.mubr.f32.gmra.mrb[0].mxu0 %v78
    %v171 = vpop.f32.mrb[0].mxu0
    %v172 = vadd.f32 0.0, %v171
    %v173 = vpop.f32.mrb[0].mxu0
    %174 = vmatprep.mubr.f32.mxu0 0.0
    %175 = vmatmul.mubr.f32.gmra.mrb[0].mxu0 %v81
    %v176 = vpop.f32.mrb[0].mxu0
    %v177 = vadd.f32 0.0, %v176
    %v178 = vpop.f32.mrb[0].mxu0
    %179 = vmatprep.mubr.f32.mxu0 0.0
    %180 = vmatmul.mubr.f32.gmra.mrb[0].mxu0 %v84
    %v181 = vpop.f32.mrb[0].mxu0
    %v182 = vadd.f32 0.0, %v181
    %v183 = vpop.f32.mrb[0].mxu0
    %184 = vmatprep.mubr.f32.mxu0 0.0
    %185 = vmatmul.mubr.f32.gmra.mrb[0].mxu0 %v87
    %v186 = vpop.f32.mrb[0].mxu0
    %v187 = vadd.f32 0.0, %v186
    %v188 = vpop.f32.mrb[0].mxu0
    %189 = vmatprep.mubr.f32.mxu0 0.0
    %190 = vmatmul.mubr.f32.gmra.mrb[0].mxu0 %v90
    %v191 = vpop.f32.mrb[0].mxu0
    %v192 = vadd.f32 0.0, %v191
    %v193 = vpop.f32.mrb[0].mxu0
    %194 = vmatprep.mubr.f32.mxu0 0.0
    %195 = vmatmul.mubr.f32.gmra.mrb[0].mxu0 %v93
    %v196 = vpop.f32.mrb[0].mxu0
    %v197 = vadd.f32 0.0, %v196
    %v198 = vpop.f32.mrb[0].mxu0
    %199 = vdwg.mxu0
    %200 = vst [vmem:[#allocation2] sm:$0xff] %v162
    %201 = vst [vmem:[#allocation2 + $0x8] sm:$0xff] %v167
    %202 = vst [vmem:[#allocation2 + $0x10] sm:$0xff] %v172
    %203 = vst [vmem:[#allocation2 + $0x18] sm:$0xff] %v177
    %204 = vst [vmem:[#allocation2 + $0x20] sm:$0xff] %v182
    %205 = vst [vmem:[#allocation2 + $0x28] sm:$0xff] %v187
    %206 = vst [vmem:[#allocation2 + $0x30] sm:$0xff] %v192
    %207 = vst [vmem:[#allocation2 + $0x38] sm:$0xff] %v197
    %v209 = vsel %vm70, %v48, 0
    %v212 = vsel %vm70, %v49, 0
    %v215 = vsel %vm70, %v50, 0
    %v218 = vsel %vm70, %v51, 0
    %v221 = vsel %vm70, %v52, 0
    %v224 = vsel %vm70, %v53, 0
    %v227 = vsel %vm70, %v54, 0
    %v230 = vsel %vm70, %v55, 0
    %232 = vmatprep.subr.mxu0 0.0
    %233 = vmatpush1.msra.mxu0 %v64
    %234 = vmatprep.subr.mxu0 0.0
    %235 = vmatpush1.msra.mxu0 %v65
    %236 = vmatprep.subr.mxu0 0.0
    %237 = vmatpush1.msra.mxu0 %v66
    %238 = vmatprep.subr.mxu0 0.0
    %239 = vmatpush1.msra.mxu0 %v67
    %240 = vmatprep.subr.mxu0 0.0
    %241 = vmatpush1.msra.mxu0 %v68
    %242 = vmatprep.subr.mxu0 0.0
    %243 = vmatpush1.msra.mxu0 %v69
    %244 = vmatprep.subr.mxu0 0.0
    %245 = vmatpush1.msra.mxu0 0.0
    %246 = vmatprep.subr.mxu0 0.0
    %247 = vmatpush1.msra.mxu0 0.0
    %248 = vmatprep.subr.mxu0 0.0
    %249 = vmatpush1.msra.mxu0 0.0
    %250 = vmatprep.subr.mxu0 0.0
    %251 = vmatpush1.msra.mxu0 0.0
    %252 = vmatprep.subr.mxu0 0.0
    %253 = vmatpush1.msra.mxu0 0.0
    %254 = vmatprep.subr.mxu0 0.0
    %255 = vmatpush1.msra.mxu0 0.0
    %256 = vmatprep.subr.mxu0 0.0
    %257 = vmatpush1.msra.mxu0 0.0
    %258 = vmatprep.subr.mxu0 0.0
    %259 = vmatpush1.msra.mxu0 0.0
    %260 = vmatprep.subr.mxu0 0.0
    %261 = vmatpush1.msra.mxu0 0.0
    %262 = vmatprep.subr.mxu0 0.0
    %263 = vmatpush1.msra.mxu0 0.0
    %264 = vmatprep.subr.mxu0 0.0
    %265 = vmatpush1.msra.mxu0 0.0
    %266 = vmatprep.subr.mxu0 0.0
    %267 = vmatpush1.msra.mxu0 0.0
    %268 = vmatprep.subr.mxu0 0.0
    %269 = vmatpush1.msra.mxu0 0.0
    %270 = vmatprep.subr.mxu0 0.0
    %271 = vmatpush1.msra.mxu0 0.0
    %272 = vmatprep.subr.mxu0 0.0
    %273 = vmatpush1.msra.mxu0 0.0
    %274 = vmatprep.subr.mxu0 0.0
    %275 = vmatpush1.msra.mxu0 0.0
    %276 = vmatprep.subr.mxu0 0.0
    %277 = vmatpush1.msra.mxu0 0.0
    %278 = vmatprep.subr.mxu0 0.0
    %279 = vmatpush1.msra.mxu0 0.0
    %280 = vmatprep.subr.mxu0 0.0
    %281 = vmatpush1.msra.mxu0 0.0
    %282 = vmatprep.subr.mxu0 0.0
    %283 = vmatpush1.msra.mxu0 0.0
    %284 = vmatprep.subr.mxu0 0.0
    %285 = vmatpush1.msra.mxu0 0.0
    %286 = vmatprep.subr.mxu0 0.0
    %287 = vmatpush1.msra.mxu0 0.0
    %288 = vmatprep.subr.mxu0 0.0
    %289 = vmatpush1.msra.mxu0 0.0
    %290 = vmatprep.subr.mxu0 0.0
    %291 = vmatpush1.msra.mxu0 0.0
    %292 = vmatprep.subr.mxu0 0.0
    %293 = vmatpush1.msra.mxu0 0.0
    %294 = vmatprep.subr.mxu0 0.0
    %295 = vmatpush1.msra.mxu0 0.0
    %296 = vmatprep.mubr.f32.mxu0 0.0
    %297 = vmatmul.mubr.f32.gmra.mrb[0].mxu0 %v209
    %v298 = vpop.f32.mrb[0].mxu0
    %v299 = vadd.f32 0.0, %v298
    %v300 = vpop.f32.mrb[0].mxu0
    %301 = vmatprep.mubr.f32.mxu0 0.0
    %302 = vmatmul.mubr.f32.gmra.mrb[0].mxu0 %v212
    %v303 = vpop.f32.mrb[0].mxu0
    %v304 = vadd.f32 0.0, %v303
    %v305 = vpop.f32.mrb[0].mxu0
    %306 = vmatprep.mubr.f32.mxu0 0.0
    %307 = vmatmul.mubr.f32.gmra.mrb[0].mxu0 %v215
    %v308 = vpop.f32.mrb[0].mxu0
    %v309 = vadd.f32 0.0, %v308
    %v310 = vpop.f32.mrb[0].mxu0
    %311 = vmatprep.mubr.f32.mxu0 0.0
    %312 = vmatmul.mubr.f32.gmra.mrb[0].mxu0 %v218
    %v313 = vpop.f32.mrb[0].mxu0
    %v314 = vadd.f32 0.0, %v313
    %v315 = vpop.f32.mrb[0].mxu0
    %316 = vmatprep.mubr.f32.mxu0 0.0
    %317 = vmatmul.mubr.f32.gmra.mrb[0].mxu0 %v221
    %v318 = vpop.f32.mrb[0].mxu0
    %v319 = vadd.f32 0.0, %v318
    %v320 = vpop.f32.mrb[0].mxu0
    %321 = vmatprep.mubr.f32.mxu0 0.0
    %322 = vmatmul.mubr.f32.gmra.mrb[0].mxu0 %v224
    %v323 = vpop.f32.mrb[0].mxu0
    %v324 = vadd.f32 0.0, %v323
    %v325 = vpop.f32.mrb[0].mxu0
    %326 = vmatprep.mubr.f32.mxu0 0.0
    %327 = vmatmul.mubr.f32.gmra.mrb[0].mxu0 %v227
    %v328 = vpop.f32.mrb[0].mxu0
    %v329 = vadd.f32 0.0, %v328
    %v330 = vpop.f32.mrb[0].mxu0
    %331 = vmatprep.mubr.f32.mxu0 0.0
    %332 = vmatmul.mubr.f32.gmra.mrb[0].mxu0 %v230
    %v333 = vpop.f32.mrb[0].mxu0
    %v334 = vadd.f32 0.0, %v333
    %v335 = vpop.f32.mrb[0].mxu0
    %336 = vdwg.mxu0
    %337 = vst [vmem:[#allocation4] sm:$0xff] %v299
    %338 = vst [vmem:[#allocation4 + $0x8] sm:$0xff] %v304
    %339 = vst [vmem:[#allocation4 + $0x10] sm:$0xff] %v309
    %340 = vst [vmem:[#allocation4 + $0x18] sm:$0xff] %v314
    %341 = vst [vmem:[#allocation4 + $0x20] sm:$0xff] %v319
    %342 = vst [vmem:[#allocation4 + $0x28] sm:$0xff] %v324
    %343 = vst [vmem:[#allocation4 + $0x30] sm:$0xff] %v329
    %344 = vst [vmem:[#allocation4 + $0x38] sm:$0xff] %v334
    %345 = vxpose.xlu0.b32.start [1/16] %v32, 128
    %346 = vxpose.xlu0.b32.cont [2/16] %v33, 128
    %347 = vxpose.xlu0.b32.cont [3/16] %v34, 128
    %348 = vxpose.xlu0.b32.cont [4/16] %v35, 128
    %349 = vxpose.xlu0.b32.cont [5/16] %v36, 128
    %350 = vxpose.xlu0.b32.cont [6/16] %v37, 128
    %351 = vxpose.xlu0.b32.cont [7/16] %v38, 128
    %352 = vxpose.xlu0.b32.cont [8/16] %v39, 128
    %353 = vxpose.xlu0.b32.cont [9/16] 0.0, 128
    %354 = vxpose.xlu0.b32.cont [10/16] 0.0, 128
    %355 = vxpose.xlu0.b32.cont [11/16] 0.0, 128
    %356 = vxpose.xlu0.b32.cont [12/16] 0.0, 128
    %357 = vxpose.xlu0.b32.cont [13/16] 0.0, 128
    %358 = vxpose.xlu0.b32.cont [14/16] 0.0, 128
    %359 = vxpose.xlu0.b32.cont [15/16] 0.0, 128
    %360 = vxpose.xlu0.b32.end [16/16] 0.0, 128
    %v361 = vpop.trf.xlu0
    %v362 = vpop.trf.xlu0
    %v363 = vpop.trf.xlu0
    %v364 = vpop.trf.xlu0
    %v365 = vpop.trf.xlu0
    %v366 = vpop.trf.xlu0
    %v367 = vpop.trf.xlu0
    %v368 = vpop.trf.xlu0
    %v369 = vpop.trf.xlu0
    %v370 = vpop.trf.xlu0
    %v371 = vpop.trf.xlu0
    %v372 = vpop.trf.xlu0
    %v373 = vpop.trf.xlu0
    %v374 = vpop.trf.xlu0
    %v375 = vpop.trf.xlu0
    %v376 = vpop.trf.xlu0
    %vm377 = vcmask 523264
    %v379 = vsel %vm377, %v361, 0
    %v382 = vsel %vm377, %v362, 0
    %v385 = vsel %vm377, %v363, 0
    %v388 = vsel %vm377, %v364, 0
    %v391 = vsel %vm377, %v365, 0
    %v394 = vsel %vm377, %v366, 0
    %396 = vmatprep.subr.mxu0 0.0
    %397 = vmatpush1.msra.mxu0 %v56
    %398 = vmatprep.subr.mxu0 0.0
    %399 = vmatpush1.msra.mxu0 %v57
    %400 = vmatprep.subr.mxu0 0.0
    %401 = vmatpush1.msra.mxu0 %v58
    %402 = vmatprep.subr.mxu0 0.0
    %403 = vmatpush1.msra.mxu0 %v59
    %404 = vmatprep.subr.mxu0 0.0
    %405 = vmatpush1.msra.mxu0 %v60
    %406 = vmatprep.subr.mxu0 0.0
    %407 = vmatpush1.msra.mxu0 %v61
    %408 = vmatprep.subr.mxu0 0.0
    %409 = vmatpush1.msra.mxu0 %v62
    %410 = vmatprep.subr.mxu0 0.0
    %411 = vmatpush1.msra.mxu0 %v63
    %412 = vmatprep.subr.mxu0 0.0
    %413 = vmatpush1.msra.mxu0 0.0
    %414 = vmatprep.subr.mxu0 0.0
    %415 = vmatpush1.msra.mxu0 0.0
    %416 = vmatprep.subr.mxu0 0.0
    %417 = vmatpush1.msra.mxu0 0.0
    %418 = vmatprep.subr.mxu0 0.0
    %419 = vmatpush1.msra.mxu0 0.0
    %420 = vmatprep.subr.mxu0 0.0
    %421 = vmatpush1.msra.mxu0 0.0
    %422 = vmatprep.subr.mxu0 0.0
    %423 = vmatpush1.msra.mxu0 0.0
    %424 = vmatprep.subr.mxu0 0.0
    %425 = vmatpush1.msra.mxu0 0.0
    %426 = vmatprep.subr.mxu0 0.0
    %427 = vmatpush1.msra.mxu0 0.0
    %428 = vmatprep.subr.mxu0 0.0
    %429 = vmatpush1.msra.mxu0 0.0
    %430 = vmatprep.subr.mxu0 0.0
    %431 = vmatpush1.msra.mxu0 0.0
    %432 = vmatprep.subr.mxu0 0.0
    %433 = vmatpush1.msra.mxu0 0.0
    %434 = vmatprep.subr.mxu0 0.0
    %435 = vmatpush1.msra.mxu0 0.0
    %436 = vmatprep.subr.mxu0 0.0
    %437 = vmatpush1.msra.mxu0 0.0
    %438 = vmatprep.subr.mxu0 0.0
    %439 = vmatpush1.msra.mxu0 0.0
    %440 = vmatprep.subr.mxu0 0.0
    %441 = vmatpush1.msra.mxu0 0.0
    %442 = vmatprep.subr.mxu0 0.0
    %443 = vmatpush1.msra.mxu0 0.0
    %444 = vmatprep.subr.mxu0 0.0
    %445 = vmatpush1.msra.mxu0 0.0
    %446 = vmatprep.subr.mxu0 0.0
    %447 = vmatpush1.msra.mxu0 0.0
    %448 = vmatprep.subr.mxu0 0.0
    %449 = vmatpush1.msra.mxu0 0.0
    %450 = vmatprep.subr.mxu0 0.0
    %451 = vmatpush1.msra.mxu0 0.0
    %452 = vmatprep.subr.mxu0 0.0
    %453 = vmatpush1.msra.mxu0 0.0
    %454 = vmatprep.subr.mxu0 0.0
    %455 = vmatpush1.msra.mxu0 0.0
    %456 = vmatprep.subr.mxu0 0.0
    %457 = vmatpush1.msra.mxu0 0.0
    %458 = vmatprep.subr.mxu0 0.0
    %459 = vmatpush1.msra.mxu0 0.0
    %460 = vmatprep.mubr.f32.mxu0 0.0
    %461 = vmatmul.mubr.f32.gmra.mrb[0].mxu0 %v379
    %v462 = vpop.f32.mrb[0].mxu0
    %v463 = vadd.f32 0.0, %v462
    %v464 = vpop.f32.mrb[0].mxu0
    %465 = vmatprep.mubr.f32.mxu0 0.0
    %466 = vmatmul.mubr.f32.gmra.mrb[0].mxu0 %v382
    %v467 = vpop.f32.mrb[0].mxu0
    %v468 = vadd.f32 0.0, %v467
    %v469 = vpop.f32.mrb[0].mxu0
    %470 = vmatprep.mubr.f32.mxu0 0.0
    %471 = vmatmul.mubr.f32.gmra.mrb[0].mxu0 %v385
    %v472 = vpop.f32.mrb[0].mxu0
    %v473 = vadd.f32 0.0, %v472
    %v474 = vpop.f32.mrb[0].mxu0
    %475 = vmatprep.mubr.f32.mxu0 0.0
    %476 = vmatmul.mubr.f32.gmra.mrb[0].mxu0 %v388
    %v477 = vpop.f32.mrb[0].mxu0
    %v478 = vadd.f32 0.0, %v477
    %v479 = vpop.f32.mrb[0].mxu0
    %480 = vmatprep.mubr.f32.mxu0 0.0
    %481 = vmatmul.mubr.f32.gmra.mrb[0].mxu0 %v391
    %v482 = vpop.f32.mrb[0].mxu0
    %v483 = vadd.f32 0.0, %v482
    %v484 = vpop.f32.mrb[0].mxu0
    %485 = vmatprep.mubr.f32.mxu0 0.0
    %486 = vmatmul.mubr.f32.gmra.mrb[0].mxu0 %v394
    %v487 = vpop.f32.mrb[0].mxu0
    %v488 = vadd.f32 0.0, %v487
    %v489 = vpop.f32.mrb[0].mxu0
    %490 = vdwg.mxu0
    %491 = vst [vmem:[#allocation6] sm:$0xff] %v463
    %492 = vst [vmem:[#allocation6 + $0x8] sm:$0xff] %v468
    %493 = vst [vmem:[#allocation6 + $0x10] sm:$0xff] %v473
    %494 = vst [vmem:[#allocation6 + $0x18] sm:$0xff] %v478
    %495 = vst [vmem:[#allocation6 + $0x20] sm:$0xff] %v483
    %496 = vst [vmem:[#allocation6 + $0x28] sm:$0xff] %v488
    %497 = vxpose.xlu0.b32.start [1/16] %v48, 128
    %498 = vxpose.xlu0.b32.cont [2/16] %v49, 128
    %499 = vxpose.xlu0.b32.cont [3/16] %v50, 128
    %500 = vxpose.xlu0.b32.cont [4/16] %v51, 128
    %501 = vxpose.xlu0.b32.cont [5/16] %v52, 128
    %502 = vxpose.xlu0.b32.cont [6/16] %v53, 128
    %503 = vxpose.xlu0.b32.cont [7/16] %v54, 128
    %504 = vxpose.xlu0.b32.cont [8/16] %v55, 128
    %505 = vxpose.xlu0.b32.cont [9/16] 0.0, 128
    %506 = vxpose.xlu0.b32.cont [10/16] 0.0, 128
    %507 = vxpose.xlu0.b32.cont [11/16] 0.0, 128
    %508 = vxpose.xlu0.b32.cont [12/16] 0.0, 128
    %509 = vxpose.xlu0.b32.cont [13/16] 0.0, 128
    %510 = vxpose.xlu0.b32.cont [14/16] 0.0, 128
    %511 = vxpose.xlu0.b32.cont [15/16] 0.0, 128
    %512 = vxpose.xlu0.b32.end [16/16] 0.0, 128
    %v513 = vpop.trf.xlu0
    %v514 = vpop.trf.xlu0
    %v515 = vpop.trf.xlu0
    %v516 = vpop.trf.xlu0
    %v517 = vpop.trf.xlu0
    %v518 = vpop.trf.xlu0
    %v519 = vpop.trf.xlu0
    %v520 = vpop.trf.xlu0
    %v521 = vpop.trf.xlu0
    %v522 = vpop.trf.xlu0
    %v523 = vpop.trf.xlu0
    %v524 = vpop.trf.xlu0
    %v525 = vpop.trf.xlu0
    %v526 = vpop.trf.xlu0
    %v527 = vpop.trf.xlu0
    %v528 = vpop.trf.xlu0
    %v530 = vsel %vm377, %v513, 0
    %v533 = vsel %vm377, %v514, 0
    %v536 = vsel %vm377, %v515, 0
    %v539 = vsel %vm377, %v516, 0
    %v542 = vsel %vm377, %v517, 0
    %v545 = vsel %vm377, %v518, 0
    %547 = vmatprep.subr.mxu0 0.0
    %548 = vmatpush1.msra.mxu0 %v56
    %549 = vmatprep.subr.mxu0 0.0
    %550 = vmatpush1.msra.mxu0 %v57
    %551 = vmatprep.subr.mxu0 0.0
    %552 = vmatpush1.msra.mxu0 %v58
    %553 = vmatprep.subr.mxu0 0.0
    %554 = vmatpush1.msra.mxu0 %v59
    %555 = vmatprep.subr.mxu0 0.0
    %556 = vmatpush1.msra.mxu0 %v60
    %557 = vmatprep.subr.mxu0 0.0
    %558 = vmatpush1.msra.mxu0 %v61
    %559 = vmatprep.subr.mxu0 0.0
    %560 = vmatpush1.msra.mxu0 %v62
    %561 = vmatprep.subr.mxu0 0.0
    %562 = vmatpush1.msra.mxu0 %v63
    %563 = vmatprep.subr.mxu0 0.0
    %564 = vmatpush1.msra.mxu0 0.0
    %565 = vmatprep.subr.mxu0 0.0
    %566 = vmatpush1.msra.mxu0 0.0
    %567 = vmatprep.subr.mxu0 0.0
    %568 = vmatpush1.msra.mxu0 0.0
    %569 = vmatprep.subr.mxu0 0.0
    %570 = vmatpush1.msra.mxu0 0.0
    %571 = vmatprep.subr.mxu0 0.0
    %572 = vmatpush1.msra.mxu0 0.0
    %573 = vmatprep.subr.mxu0 0.0
    %574 = vmatpush1.msra.mxu0 0.0
    %575 = vmatprep.subr.mxu0 0.0
    %576 = vmatpush1.msra.mxu0 0.0
    %577 = vmatprep.subr.mxu0 0.0
    %578 = vmatpush1.msra.mxu0 0.0
    %579 = vmatprep.subr.mxu0 0.0
    %580 = vmatpush1.msra.mxu0 0.0
    %581 = vmatprep.subr.mxu0 0.0
    %582 = vmatpush1.msra.mxu0 0.0
    %583 = vmatprep.subr.mxu0 0.0
    %584 = vmatpush1.msra.mxu0 0.0
    %585 = vmatprep.subr.mxu0 0.0
    %586 = vmatpush1.msra.mxu0 0.0
    %587 = vmatprep.subr.mxu0 0.0
    %588 = vmatpush1.msra.mxu0 0.0
    %589 = vmatprep.subr.mxu0 0.0
    %590 = vmatpush1.msra.mxu0 0.0
    %591 = vmatprep.subr.mxu0 0.0
    %592 = vmatpush1.msra.mxu0 0.0
    %593 = vmatprep.subr.mxu0 0.0
    %594 = vmatpush1.msra.mxu0 0.0
    %595 = vmatprep.subr.mxu0 0.0
    %596 = vmatpush1.msra.mxu0 0.0
    %597 = vmatprep.subr.mxu0 0.0
    %598 = vmatpush1.msra.mxu0 0.0
    %599 = vmatprep.subr.mxu0 0.0
    %600 = vmatpush1.msra.mxu0 0.0
    %601 = vmatprep.subr.mxu0 0.0
    %602 = vmatpush1.msra.mxu0 0.0
    %603 = vmatprep.subr.mxu0 0.0
    %604 = vmatpush1.msra.mxu0 0.0
    %605 = vmatprep.subr.mxu0 0.0
    %606 = vmatpush1.msra.mxu0 0.0
    %607 = vmatprep.subr.mxu0 0.0
    %608 = vmatpush1.msra.mxu0 0.0
    %609 = vmatprep.subr.mxu0 0.0
    %610 = vmatpush1.msra.mxu0 0.0
    %611 = vmatprep.mubr.f32.mxu0 0.0
    %612 = vmatmul.mubr.f32.gmra.mrb[0].mxu0 %v530
    %v613 = vpop.f32.mrb[0].mxu0
    %v614 = vadd.f32 0.0, %v613
    %v615 = vpop.f32.mrb[0].mxu0
    %616 = vmatprep.mubr.f32.mxu0 0.0
    %617 = vmatmul.mubr.f32.gmra.mrb[0].mxu0 %v533
    %v618 = vpop.f32.mrb[0].mxu0
    %v619 = vadd.f32 0.0, %v618
    %v620 = vpop.f32.mrb[0].mxu0
    %621 = vmatprep.mubr.f32.mxu0 0.0
    %622 = vmatmul.mubr.f32.gmra.mrb[0].mxu0 %v536
    %v623 = vpop.f32.mrb[0].mxu0
    %v624 = vadd.f32 0.0, %v623
    %v625 = vpop.f32.mrb[0].mxu0
    %626 = vmatprep.mubr.f32.mxu0 0.0
    %627 = vmatmul.mubr.f32.gmra.mrb[0].mxu0 %v539
    %v628 = vpop.f32.mrb[0].mxu0
    %v629 = vadd.f32 0.0, %v628
    %v630 = vpop.f32.mrb[0].mxu0
    %631 = vmatprep.mubr.f32.mxu0 0.0
    %632 = vmatmul.mubr.f32.gmra.mrb[0].mxu0 %v542
    %v633 = vpop.f32.mrb[0].mxu0
    %v634 = vadd.f32 0.0, %v633
    %v635 = vpop.f32.mrb[0].mxu0
    %636 = vmatprep.mubr.f32.mxu0 0.0
    %637 = vmatmul.mubr.f32.gmra.mrb[0].mxu0 %v545
    %v638 = vpop.f32.mrb[0].mxu0
    %v639 = vadd.f32 0.0, %v638
    %v640 = vpop.f32.mrb[0].mxu0
    %641 = vdwg.mxu0
    %642 = vst [vmem:[#allocation7] sm:$0xff] %v614
    %643 = vst [vmem:[#allocation7 + $0x8] sm:$0xff] %v619
    %644 = vst [vmem:[#allocation7 + $0x10] sm:$0xff] %v624
    %645 = vst [vmem:[#allocation7 + $0x18] sm:$0xff] %v629
    %646 = vst [vmem:[#allocation7 + $0x20] sm:$0xff] %v634
    %647 = vst [vmem:[#allocation7 + $0x28] sm:$0xff] %v639
    // Predicated region
    $region18: #{rgc_layer.1} parent=1 // pred_check
      _
    $region19: #{rgc_layer.1} parent=1 // pred_check_branch
      %649 = sbr.rel (0) target = $region21
    $region20: #{rgc_layer.1} parent=1 // pred_region
      %s651 = ssub.s32 1024, 1024
      %652 = vsyncadd [#allocation3], %s651
      %s653 = sshll.u32 [#allocation2], 4
      %s654 = int_to_ptr.vmem [resolvable:$true] %s653
      %659 = dma.vmem_to_hbm [thread:$0]  %s654, 1024, %s4, [#allocation3], 128, 128, 8
    $region21: #{rgc_layer.1} parent=1 // pred_fallthru
      _
    // Predicated region
    $region22: #{rgc_layer.1} parent=1 // pred_check
      _
    $region23: #{rgc_layer.1} parent=1 // pred_check_branch
      %661 = sbr.rel (0) target = $region25
    $region24: #{rgc_layer.1} parent=1 // pred_region
      %s663 = ssub.s32 1024, 1024
      %664 = vsyncadd [#allocation5], %s663
      %s665 = sshll.u32 [#allocation4], 4
      %s666 = int_to_ptr.vmem [resolvable:$true] %s665
      %671 = dma.vmem_to_hbm [thread:$0]  %s666, 1024, %s5, [#allocation5], 128, 128, 8
    $region25: #{rgc_layer.1} parent=1 // pred_fallthru
      _
    // Predicated region
    $region26: #{rgc_layer.1} parent=1 // pred_check
      _
    $region27: #{rgc_layer.1} parent=1 // pred_check_branch
      %673 = sbr.rel (0) target = $region29
    $region28: #{rgc_layer.1} parent=1 // pred_region
      %s675 = ssub.s32 768, 768
      %676 = vsyncadd [#allocation5], %s675
      %s677 = sshll.u32 [#allocation6], 4
      %s678 = int_to_ptr.vmem [resolvable:$true] %s677
      %683 = dma.vmem_to_hbm [thread:$0]  %s678, 768, %s6, [#allocation5], 128, 128, 8
    $region29: #{rgc_layer.1} parent=1 // pred_fallthru
      _
    // Predicated region
    $region30: #{rgc_layer.1} parent=1 // pred_check
      _
    $region31: #{rgc_layer.1} parent=1 // pred_check_branch
      %685 = sbr.rel (0) target = $region33
    $region32: #{rgc_layer.1} parent=1 // pred_region
      %s687 = ssub.s32 768, 768
      %688 = vsyncadd [#allocation8], %s687
      %s689 = sshll.u32 [#allocation7], 4
      %s690 = int_to_ptr.vmem [resolvable:$true] %s689
      %695 = dma.vmem_to_hbm [thread:$0]  %s690, 768, %s7, [#allocation8], 128, 128, 8
    $region33: #{rgc_layer.1} parent=1 // pred_fallthru
      _
    // Predicated region
    $region34: #{rgc_layer.1} parent=1 // pred_check
      _
    $region35: #{rgc_layer.1} parent=1 // pred_check_branch
      %697 = sbr.rel (0) target = $region37
    $region36: #{rgc_layer.1} parent=1 // pred_region
      %698 = dma.done [#allocation3], 1024
    $region37: #{rgc_layer.1} parent=1 // pred_fallthru
      _
    // Predicated region
    $region38: #{rgc_layer.1} parent=1 // pred_check
      _
    $region39: #{rgc_layer.1} parent=1 // pred_check_branch
      %700 = sbr.rel (0) target = $region41
    $region40: #{rgc_layer.1} parent=1 // pred_region
      %701 = dma.done [#allocation5], 1024
    $region41: #{rgc_layer.1} parent=1 // pred_fallthru
      _
    // Predicated region
    $region42: #{rgc_layer.1} parent=1 // pred_check
      _
    $region43: #{rgc_layer.1} parent=1 // pred_check_branch
      %703 = sbr.rel (0) target = $region45
    $region44: #{rgc_layer.1} parent=1 // pred_region
      %704 = dma.done [#allocation5], 768
    $region45: #{rgc_layer.1} parent=1 // pred_fallthru
      _
    // Predicated region
    $region46: #{rgc_layer.1} parent=1 // pred_check
      _
    $region47: #{rgc_layer.1} parent=1 // pred_check_branch
      %706 = sbr.rel (0) target = $region49
    $region48: #{rgc_layer.1} parent=1 // pred_region
      %707 = dma.done [#allocation8], 768
    $region49: #{rgc_layer.1} parent=1 // pred_fallthru
      _
    %708 = vsyncpa [#allocation3], 1
    %709 = vsyncpa [#allocation5], 1
    %710 = vsyncpa [#allocation8], 1

</llo_original>
